<compile_context>
chip_gen: v7x
topology: tpu7x:2x2x1
jax: 0.10.0
libtpu: 0.0.40
codegen_flags: <defaults>
</compile_context>

<pallas_src>
import functools

import jax
import jax.numpy as jnp
from jax.experimental import pallas as pl
from jax.experimental.pallas import tpu as pltpu


def _vmem_spec():
    return pl.BlockSpec(memory_space=pltpu.MemorySpace.VMEM)


# --------------------------------------------------------------------------
# Kernel 1: hoisted i2h matmul + ResRNN recurrence
# --------------------------------------------------------------------------
def _rnn_kernel(x_ref, wi_ref, bih_ref, wh_ref, hn_ref, xw_ref,
                *, seq_len, res_depth, compute_dtype):
    T = seq_len
    B = hn_ref.shape[1]
    cd = compute_dtype

    # Hoisted i2h: one (T*B, D) x (D, H) matmul for all steps; bi + bh are
    # pre-folded in the wrapper so there is a single bias add.
    xw_ref[...] = (jnp.dot(x_ref[...], wi_ref[...],
                           preferred_element_type=jnp.float32) + bih_ref[...])

    wh = wh_ref[...]
    h0 = jnp.zeros((B, wh.shape[0]), jnp.float32)
    ht = h0
    hstart = h0                       # assigned at step 0

    # seq_len / res_depth are static -> unrolled at trace time, mirroring the
    # Python branch structure of ResRNN_Cell.forward exactly.
    for i in range(T):
        xw_i = xw_ref[pl.ds(i * B, B), :]                         # (B, H)
        hn = xw_i + jnp.dot(h0.astype(cd), wh,
                            preferred_element_type=jnp.float32)
        if i == 0:
            hstart = hn               # h0 stays zero (as in torch)
        elif i == T - 2:
            h0 = jnp.tanh(hn + hstart)
        elif res_depth == 1:
            h0 = jnp.tanh(hn + h0)
        elif i % res_depth == 0:
            h0 = jnp.tanh(hn + ht)
            ht = hn
        else:
            h0 = jnp.tanh(hn)
        hn_ref[i] = hn                                            # (B, H)


# --------------------------------------------------------------------------
# Kernel 2: attention scores + softmax + weighting + final dense (fused)
# --------------------------------------------------------------------------
def _attn_dense_kernel(hc_ref, wab_ref, ba_ref, exp_ref, wd_ref, bd_ref,
                       out_ref, *, compute_dtype):
    cd = compute_dtype
    hc = hc_ref[...]                                              # (B, T*H) f32

    # All T attention logits in one matmul (wab is block-diagonal wa), emitted
    # directly in the (B, T) layout of torch's .view((B, -1)).
    s = jnp.dot(hc, wab_ref[...],
                preferred_element_type=jnp.float32) + ba_ref[...]

    m = jnp.max(s, axis=-1, keepdims=True)
    e = jnp.exp(s - m)
    attn = e / jnp.sum(e, axis=-1, keepdims=True)                 # (B, T)
    # TODO(synk): pl.reciprocal(..., approx=True) would move the divide to the
    # EUP slot; kept exact to stay bit-close to the f32 reference.

    # In-kernel broadcast of attn over each hidden block (each column repeated
    # H times) via a 0/1 expansion matmul -- no (B, T*H) attention tensor is
    # ever materialized in HBM.
    attn_full = jnp.dot(attn, exp_ref[...],
                        preferred_element_type=jnp.float32)       # (B, T*H)
    xcat = (hc * attn_full).astype(cd)

    out_ref[...] = (jnp.dot(xcat, wd_ref[...],
                            preferred_element_type=jnp.float32) + bd_ref[...])


# --------------------------------------------------------------------------
# Wrapper
# --------------------------------------------------------------------------
def rnn_attention_forward(x, params, *, seq_len, res_depth, merge="concat",
                          compute_dtype=jnp.float32):
    # TODO(synk): merge='mean' path not implemented (module default is 'concat').
    assert merge == "concat"
    B, T, D = x.shape
    assert T == seq_len
    H = params["wi"].shape[1]
    O = params["wd"].shape[1]
    cd = compute_dtype

    # ---- wrapper-side layout plumbing (cheap, done once) ---------------------
    x_flat = jnp.transpose(x, (1, 0, 2)).reshape(T * B, D).astype(cd)
    bih = (params["bi"] + params["bh"]).astype(jnp.float32)       # folded bias
    # Block-diagonal att_fc weight (T*H, T): one batched matmul replaces T
    # lane-sparse N=1 score matmuls and lands scores in the (B, T) view layout.
    wa_big = (jnp.eye(T, dtype=jnp.float32)[:, None, :]
              * params["wa"][:, 0].astype(jnp.float32)[None, :, None]
              ).reshape(T * H, T)
    # 0/1 expansion matrix: broadcasts attention column t over its H lanes.
    expand = jnp.repeat(jnp.eye(T, dtype=jnp.float32), H, axis=1)  # (T, T*H)

    # ---- kernel 1: recurrence ------------------------------------------------
    hn = pl.pallas_call(
        functools.partial(_rnn_kernel, seq_len=T, res_depth=res_depth,
                          compute_dtype=cd),
        out_shape=jax.ShapeDtypeStruct((T, B, H), jnp.float32),
        in_specs=[_vmem_spec()] * 4,
        out_specs=_vmem_spec(),
        scratch_shapes=[pltpu.VMEM((T * B, H), jnp.float32)],
    )(x_flat, params["wi"].astype(cd), bih, params["wh"].astype(cd))

    # torch flat-order regroup: (T, B, H) -> (B, T*H).  This mixes batch rows
    # when B > 1 -- an upstream quirk of the module's .view usage, reproduced
    # faithfully here.  Done as one tiny XLA reshape between the two kernels.
    hc = hn.reshape(B, T * H)

    # ---- kernel 2: attention + dense ----------------------------------------
    out = pl.pallas_call(
        functools.partial(_attn_dense_kernel, compute_dtype=cd),
        out_shape=jax.ShapeDtypeStruct((B, O), jnp.float32),
        in_specs=[_vmem_spec()] * 6,
        out_specs=_vmem_spec(),
    )(hc, wa_big, params["ba"].astype(jnp.float32), expand,
      params["wd"].astype(cd), params["bd"].astype(jnp.float32))
    return out


# --------------------------------------------------------------------------
# Deterministic parameter init (matches nn.Linear shapes; fan_in uniform)
# Note: ResRNN_Cell.h2o and ResRNN_Cell.fc are never used in forward -> omitted.
# --------------------------------------------------------------------------
def init_params(key, input_dim, hidden, output_dim, seq_len):
    ks = jax.random.split(key, 8)

    def lin(kw, kb, fan_in, fan_out):
        bound = 1.0 / float(fan_in) ** 0.5
        w = jax.random.uniform(kw, (fan_in, fan_out), jnp.float32, -bound, bound)
        b = jax.random.uniform(kb, (1, fan_out), jnp.float32, -bound, bound)
        return w, b

    wi, bi = lin(ks[0], ks[1], input_dim, hidden)             # i2h
    wh, bh = lin(ks[2], ks[3], hidden, hidden)                # h2h
    wa, ba = lin(ks[4], ks[5], hidden, 1)                     # att_fc
    wd, bd = lin(ks[6], ks[7], hidden * seq_len, output_dim)  # dense (concat)
    return dict(wi=wi, bi=bi, wh=wh, bh=bh, wa=wa, ba=ba, wd=wd, bd=bd)


# --------------------------------------------------------------------------
# Pure-JAX reference (mirrors the PyTorch forward) for a numerical check
# --------------------------------------------------------------------------
def reference_forward(x, params, *, seq_len, res_depth):
    B, T, D = x.shape
    H = params["wi"].shape[1]
    h0 = jnp.zeros((B, H), jnp.float32)
    ht = h0
    hstart = h0
    outs = []
    for i in range(T):
        hn = (x[:, i, :] @ params["wi"] + params["bi"]
              + h0 @ params["wh"] + params["bh"])
        if i == 0:
            hstart = hn
        elif i == T - 2:
            h0 = jnp.tanh(hn + hstart)
        elif res_depth == 1:
            h0 = jnp.tanh(hn + h0)
        elif i % res_depth == 0:
            h0 = jnp.tanh(hn + ht)
            ht = hn
        else:
            h0 = jnp.tanh(hn)
        outs.append(hn)
    rnn = jnp.stack(outs, 0)                                     # (T, B, H)
    att = (rnn.reshape(-1, H) @ params["wa"] + params["ba"]).reshape(T, B, 1)
    att = att.reshape(B, -1)
    att = jax.nn.softmax(att, axis=1)
    att = att.reshape(-1, B, 1)
    rnn = rnn * att
    xcat = rnn.reshape(-1, H * T)
    return xcat @ params["wd"] + params["bd"]


if __name__ == "__main__":
    input_dim, hidden, output_dim = 4, 32, 4
    res_depth, seq_len, batch = 3, 8, 2

    key = jax.random.PRNGKey(0)
    kx, kp = jax.random.split(key)
    x = jax.random.normal(kx, (batch, seq_len, input_dim), dtype=jnp.float32)
    params = init_params(kp, input_dim, hidden, output_dim, seq_len)

    ref = reference_forward(x, params, seq_len=seq_len, res_depth=res_depth)

    # Full-precision (f32) matmul path.
    out = rnn_attention_forward(x, params, seq_len=seq_len, res_depth=res_depth)
    out = jax.block_until_ready(out)
    assert out.shape == (batch, output_dim)
    # Tolerance chosen to catch any layout/indexing bug while allowing for the
    # TPU matmul-precision defaults of the different matmul groupings.
    assert jnp.allclose(out, ref, rtol=2e-3, atol=2e-3), (out, ref)

    # Reduced-precision path: bf16 matmul operands, f32 accumulation.
    out_bf16 = rnn_attention_forward(x, params, seq_len=seq_len,
                                     res_depth=res_depth,
                                     compute_dtype=jnp.bfloat16)
    out_bf16 = jax.block_until_ready(out_bf16)
    assert out_bf16.shape == (batch, output_dim)
    assert jnp.allclose(out_bf16, ref, rtol=5e-2, atol=5e-2), (out_bf16, ref)

    print("KERNEL_OK")
</pallas_src>

<mosaic_0001>
module attributes {stable_mosaic.version = 11 : i64} {
  func.func @_rnn_kernel(%arg0: memref<16x4xf32, #tpu.memory_space<vmem>>, %arg1: memref<4x32xf32, #tpu.memory_space<vmem>>, %arg2: memref<1x32xf32, #tpu.memory_space<vmem>>, %arg3: memref<32x32xf32, #tpu.memory_space<vmem>>, %arg4: memref<8x2x32xf32, #tpu.memory_space<vmem>>, %arg5: memref<16x32xf32, #tpu.memory_space<vmem>>) attributes {dimension_semantics = [], scalar_prefetch = 0 : i64, scratch_operands = 1 : i64, tpu.core_type = #tpu.core_type<tc>} {
    %c0 = arith.constant 0 : index
    %c0_0 = arith.constant 0 : index
    %0 = vector.load %arg0[%c0, %c0_0] : memref<16x4xf32, #tpu.memory_space<vmem>>, vector<16x4xf32>
    %c0_1 = arith.constant 0 : index
    %c0_2 = arith.constant 0 : index
    %1 = vector.load %arg1[%c0_1, %c0_2] : memref<4x32xf32, #tpu.memory_space<vmem>>, vector<4x32xf32>
    %cst = arith.constant dense<0.000000e+00> : vector<16x32xf32>
    %2 = tpu.matmul %0, %1, %cst {dimension_numbers = #tpu.dot_dimension_numbers<[1], [0], [0], [1], [0, 0, 1, 1], [], []>} : vector<16x4xf32>, vector<4x32xf32>, vector<16x32xf32> -> vector<16x32xf32>
    %c0_3 = arith.constant 0 : index
    %c0_4 = arith.constant 0 : index
    %3 = vector.load %arg2[%c0_3, %c0_4] : memref<1x32xf32, #tpu.memory_space<vmem>>, vector<1x32xf32>
    %4 = vector.broadcast %3 : vector<1x32xf32> to vector<16x32xf32>
    %5 = arith.addf %2, %4 : vector<16x32xf32>
    %c0_5 = arith.constant 0 : index
    %c0_6 = arith.constant 0 : index
    %6 = vector.load %arg5[%c0_5, %c0_6] : memref<16x32xf32, #tpu.memory_space<vmem>>, vector<16x32xf32>
    tpu.vector_store %arg5[%c0_5, %c0_6], %5 {strides = array<i32>} : memref<16x32xf32, #tpu.memory_space<vmem>>, vector<16x32xf32>,
    %c0_7 = arith.constant 0 : index
    %c0_8 = arith.constant 0 : index
    %7 = vector.load %arg3[%c0_7, %c0_8] : memref<32x32xf32, #tpu.memory_space<vmem>>, vector<32x32xf32>
    %cst_9 = arith.constant 0.000000e+00 : f32
    %8 = vector.broadcast %cst_9 : f32 to vector<2x32xf32>
    %c0_10 = arith.constant 0 : index
    %c0_11 = arith.constant 0 : index
    %9 = vector.load %arg5[%c0_10, %c0_11] : memref<16x32xf32, #tpu.memory_space<vmem>>, vector<2x32xf32>
    %cst_12 = arith.constant dense<0.000000e+00> : vector<2x32xf32>
    %10 = tpu.matmul %8, %7, %cst_12 {dimension_numbers = #tpu.dot_dimension_numbers<[1], [0], [0], [1], [0, 0, 1, 1], [], []>} : vector<2x32xf32>, vector<32x32xf32>, vector<2x32xf32> -> vector<2x32xf32>
    %11 = arith.addf %9, %10 : vector<2x32xf32>
    %c0_13 = arith.constant 0 : index
    %c0_14 = arith.constant 0 : index
    %c0_15 = arith.constant 0 : index
    %12 = vector.load %arg4[%c0_13, %c0_14, %c0_15] : memref<8x2x32xf32, #tpu.memory_space<vmem>>, vector<1x2x32xf32>
    %13 = vector.shape_cast %12 : vector<1x2x32xf32> to vector<2x32xf32>
    %14 = vector.shape_cast %11 : vector<2x32xf32> to vector<1x2x32xf32>
    tpu.vector_store %arg4[%c0_13, %c0_14, %c0_15], %14 {strides = array<i32>} : memref<8x2x32xf32, #tpu.memory_space<vmem>>, vector<1x2x32xf32>,
    %c2 = arith.constant 2 : index
    %c0_16 = arith.constant 0 : index
    %15 = vector.load %arg5[%c2, %c0_16] : memref<16x32xf32, #tpu.memory_space<vmem>>, vector<2x32xf32>
    %cst_17 = arith.constant dense<0.000000e+00> : vector<2x32xf32>
    %16 = tpu.matmul %8, %7, %cst_17 {dimension_numbers = #tpu.dot_dimension_numbers<[1], [0], [0], [1], [0, 0, 1, 1], [], []>} : vector<2x32xf32>, vector<32x32xf32>, vector<2x32xf32> -> vector<2x32xf32>
    %17 = arith.addf %15, %16 : vector<2x32xf32>
    %18 = math.tanh %17 : vector<2x32xf32>
    %c1 = arith.constant 1 : index
    %c0_18 = arith.constant 0 : index
    %c0_19 = arith.constant 0 : index
    %19 = vector.load %arg4[%c1, %c0_18, %c0_19] : memref<8x2x32xf32, #tpu.memory_space<vmem>>, vector<1x2x32xf32>
    %20 = vector.shape_cast %19 : vector<1x2x32xf32> to vector<2x32xf32>
    %21 = vector.shape_cast %17 : vector<2x32xf32> to vector<1x2x32xf32>
    tpu.vector_store %arg4[%c1, %c0_18, %c0_19], %21 {strides = array<i32>} : memref<8x2x32xf32, #tpu.memory_space<vmem>>, vector<1x2x32xf32>,
    %c4 = arith.constant 4 : index
    %c0_20 = arith.constant 0 : index
    %22 = vector.load %arg5[%c4, %c0_20] : memref<16x32xf32, #tpu.memory_space<vmem>>, vector<2x32xf32>
    %cst_21 = arith.constant dense<0.000000e+00> : vector<2x32xf32>
    %23 = tpu.matmul %18, %7, %cst_21 {dimension_numbers = #tpu.dot_dimension_numbers<[1], [0], [0], [1], [0, 0, 1, 1], [], []>} : vector<2x32xf32>, vector<32x32xf32>, vector<2x32xf32> -> vector<2x32xf32>
    %24 = arith.addf %22, %23 : vector<2x32xf32>
    %25 = math.tanh %24 : vector<2x32xf32>
    %c2_22 = arith.constant 2 : index
    %c0_23 = arith.constant 0 : index
    %c0_24 = arith.constant 0 : index
    %26 = vector.load %arg4[%c2_22, %c0_23, %c0_24] : memref<8x2x32xf32, #tpu.memory_space<vmem>>, vector<1x2x32xf32>
    %27 = vector.shape_cast %26 : vector<1x2x32xf32> to vector<2x32xf32>
    %28 = vector.shape_cast %24 : vector<2x32xf32> to vector<1x2x32xf32>
    tpu.vector_store %arg4[%c2_22, %c0_23, %c0_24], %28 {strides = array<i32>} : memref<8x2x32xf32, #tpu.memory_space<vmem>>, vector<1x2x32xf32>,
    %c6 = arith.constant 6 : index
    %c0_25 = arith.constant 0 : index
    %29 = vector.load %arg5[%c6, %c0_25] : memref<16x32xf32, #tpu.memory_space<vmem>>, vector<2x32xf32>
    %cst_26 = arith.constant dense<0.000000e+00> : vector<2x32xf32>
    %30 = tpu.matmul %25, %7, %cst_26 {dimension_numbers = #tpu.dot_dimension_numbers<[1], [0], [0], [1], [0, 0, 1, 1], [], []>} : vector<2x32xf32>, vector<32x32xf32>, vector<2x32xf32> -> vector<2x32xf32>
    %31 = arith.addf %29, %30 : vector<2x32xf32>
    %32 = arith.addf %31, %8 : vector<2x32xf32>
    %33 = math.tanh %32 : vector<2x32xf32>
    %c3 = arith.constant 3 : index
    %c0_27 = arith.constant 0 : index
    %c0_28 = arith.constant 0 : index
    %34 = vector.load %arg4[%c3, %c0_27, %c0_28] : memref<8x2x32xf32, #tpu.memory_space<vmem>>, vector<1x2x32xf32>
    %35 = vector.shape_cast %34 : vector<1x2x32xf32> to vector<2x32xf32>
    %36 = vector.shape_cast %31 : vector<2x32xf32> to vector<1x2x32xf32>
    tpu.vector_store %arg4[%c3, %c0_27, %c0_28], %36 {strides = array<i32>} : memref<8x2x32xf32, #tpu.memory_space<vmem>>, vector<1x2x32xf32>,
    %c8 = arith.constant 8 : index
    %c0_29 = arith.constant 0 : index
    %37 = vector.load %arg5[%c8, %c0_29] : memref<16x32xf32, #tpu.memory_space<vmem>>, vector<2x32xf32>
    %cst_30 = arith.constant dense<0.000000e+00> : vector<2x32xf32>
    %38 = tpu.matmul %33, %7, %cst_30 {dimension_numbers = #tpu.dot_dimension_numbers<[1], [0], [0], [1], [0, 0, 1, 1], [], []>} : vector<2x32xf32>, vector<32x32xf32>, vector<2x32xf32> -> vector<2x32xf32>
    %39 = arith.addf %37, %38 : vector<2x32xf32>
    %40 = math.tanh %39 : vector<2x32xf32>
    %c4_31 = arith.constant 4 : index
    %c0_32 = arith.constant 0 : index
    %c0_33 = arith.constant 0 : index
    %41 = vector.load %arg4[%c4_31, %c0_32, %c0_33] : memref<8x2x32xf32, #tpu.memory_space<vmem>>, vector<1x2x32xf32>
    %42 = vector.shape_cast %41 : vector<1x2x32xf32> to vector<2x32xf32>
    %43 = vector.shape_cast %39 : vector<2x32xf32> to vector<1x2x32xf32>
    tpu.vector_store %arg4[%c4_31, %c0_32, %c0_33], %43 {strides = array<i32>} : memref<8x2x32xf32, #tpu.memory_space<vmem>>, vector<1x2x32xf32>,
    %c10 = arith.constant 10 : index
    %c0_34 = arith.constant 0 : index
    %44 = vector.load %arg5[%c10, %c0_34] : memref<16x32xf32, #tpu.memory_space<vmem>>, vector<2x32xf32>
    %cst_35 = arith.constant dense<0.000000e+00> : vector<2x32xf32>
    %45 = tpu.matmul %40, %7, %cst_35 {dimension_numbers = #tpu.dot_dimension_numbers<[1], [0], [0], [1], [0, 0, 1, 1], [], []>} : vector<2x32xf32>, vector<32x32xf32>, vector<2x32xf32> -> vector<2x32xf32>
    %46 = arith.addf %44, %45 : vector<2x32xf32>
    %47 = math.tanh %46 : vector<2x32xf32>
    %c5 = arith.constant 5 : index
    %c0_36 = arith.constant 0 : index
    %c0_37 = arith.constant 0 : index
    %48 = vector.load %arg4[%c5, %c0_36, %c0_37] : memref<8x2x32xf32, #tpu.memory_space<vmem>>, vector<1x2x32xf32>
    %49 = vector.shape_cast %48 : vector<1x2x32xf32> to vector<2x32xf32>
    %50 = vector.shape_cast %46 : vector<2x32xf32> to vector<1x2x32xf32>
    tpu.vector_store %arg4[%c5, %c0_36, %c0_37], %50 {strides = array<i32>} : memref<8x2x32xf32, #tpu.memory_space<vmem>>, vector<1x2x32xf32>,
    %c12 = arith.constant 12 : index
    %c0_38 = arith.constant 0 : index
    %51 = vector.load %arg5[%c12, %c0_38] : memref<16x32xf32, #tpu.memory_space<vmem>>, vector<2x32xf32>
    %cst_39 = arith.constant dense<0.000000e+00> : vector<2x32xf32>
    %52 = tpu.matmul %47, %7, %cst_39 {dimension_numbers = #tpu.dot_dimension_numbers<[1], [0], [0], [1], [0, 0, 1, 1], [], []>} : vector<2x32xf32>, vector<32x32xf32>, vector<2x32xf32> -> vector<2x32xf32>
    %53 = arith.addf %51, %52 : vector<2x32xf32>
    %54 = arith.addf %53, %11 : vector<2x32xf32>
    %55 = math.tanh %54 : vector<2x32xf32>
    %c6_40 = arith.constant 6 : index
    %c0_41 = arith.constant 0 : index
    %c0_42 = arith.constant 0 : index
    %56 = vector.load %arg4[%c6_40, %c0_41, %c0_42] : memref<8x2x32xf32, #tpu.memory_space<vmem>>, vector<1x2x32xf32>
    %57 = vector.shape_cast %56 : vector<1x2x32xf32> to vector<2x32xf32>
    %58 = vector.shape_cast %53 : vector<2x32xf32> to vector<1x2x32xf32>
    tpu.vector_store %arg4[%c6_40, %c0_41, %c0_42], %58 {strides = array<i32>} : memref<8x2x32xf32, #tpu.memory_space<vmem>>, vector<1x2x32xf32>,
    %c14 = arith.constant 14 : index
    %c0_43 = arith.constant 0 : index
    %59 = vector.load %arg5[%c14, %c0_43] : memref<16x32xf32, #tpu.memory_space<vmem>>, vector<2x32xf32>
    %cst_44 = arith.constant dense<0.000000e+00> : vector<2x32xf32>
    %60 = tpu.matmul %55, %7, %cst_44 {dimension_numbers = #tpu.dot_dimension_numbers<[1], [0], [0], [1], [0, 0, 1, 1], [], []>} : vector<2x32xf32>, vector<32x32xf32>, vector<2x32xf32> -> vector<2x32xf32>
    %61 = arith.addf %59, %60 : vector<2x32xf32>
    %c7 = arith.constant 7 : index
    %c0_45 = arith.constant 0 : index
    %c0_46 = arith.constant 0 : index
    %62 = vector.load %arg4[%c7, %c0_45, %c0_46] : memref<8x2x32xf32, #tpu.memory_space<vmem>>, vector<1x2x32xf32>
    %63 = vector.shape_cast %62 : vector<1x2x32xf32> to vector<2x32xf32>
    %64 = vector.shape_cast %61 : vector<2x32xf32> to vector<1x2x32xf32>
    tpu.vector_store %arg4[%c7, %c0_45, %c0_46], %64 {strides = array<i32>} : memref<8x2x32xf32, #tpu.memory_space<vmem>>, vector<1x2x32xf32>,
    return
  }
}

</mosaic_0001>

<llo_original>
// kernel: tpu_custom_call.1
$region0: #{tpu_custom_call.1}
  #allocation0 [shape = 'u32[]', space=smem, size = 0x4, offset = 0x4, fixed_abs, tag = 'smem constant byte address 0x4 - core index']
  #allocation1 [shape = 'u32[144,128]{1,0:T(1,128)}', space=vmem, size = 0x12000, scoped, tag = 'internal scratch']
  #allocation2 [shape = 'f32[16,32]{1,0:T(8,128)}', space=vmem, size = 0x2000, scoped, tag = 'scratch operand']
  %s0 = inlined_call_operand.vmem [shape: f32[16,4], index: 0, kind: input, shape index: {}]
  %s1 = inlined_call_operand.vmem [shape: f32[4,32], index: 1, kind: input, shape index: {}]
  %s2 = inlined_call_operand.vmem [shape: f32[1,32], index: 2, kind: input, shape index: {}]
  %s3 = inlined_call_operand.hbm [shape: f32[32,32], index: 3, kind: input, shape index: {}]
  %s4 = inlined_call_operand.hbm [shape: f32[8,2,32], index: 4, kind: output, shape index: {}]
  %s5 = sld [smem:[#allocation0]]
  $region30: #{tpu_custom_call.1} parent=0
    _
  %s7 = ssub.s32 1, %s5
  %s8 = scalar_select 0, %s7, %s5
  $region1: #{tpu_custom_call.1} parent=0
    #allocation3 [shape = 'u8[16384]{0}', space=vmem, size = 0x4000, scoped, tag = 'input window, operand 3, single buffered']
    #allocation4 [shape = 's32[1]{0}', space=sflag, size = 0x4, scoped, tag = 'scoped memory for tpu_custom_call.1']
    #allocation5 [shape = 's32[1]{0}', space=sflag, size = 0x4, scoped, tag = 'scoped memory for tpu_custom_call.1']
    #allocation6 [shape = 'u8[8192]{0}', space=vmem, size = 0x2000, scoped, tag = 'output window, operand 0, single buffered']
    %9 = vsyncpa [#allocation4], 0
    %10 = vsyncpa [#allocation5], 0
    // Predicated region
    $region2: #{tpu_custom_call.1} parent=1 // pred_check
      _
    $region3: #{tpu_custom_call.1} parent=1 // pred_check_branch
      %12 = sbr.rel (0) target = $region5
    $region4: #{tpu_custom_call.1} parent=1 // pred_region
      _
    $region5: #{tpu_custom_call.1} parent=1 // pred_fallthru
      _
    // Predicated region
    $region6: #{tpu_custom_call.1} parent=1 // pred_check
      _
    $region7: #{tpu_custom_call.1} parent=1 // pred_check_branch
      %14 = sbr.rel (0) target = $region9
    $region8: #{tpu_custom_call.1} parent=1 // pred_region
      _
    $region9: #{tpu_custom_call.1} parent=1 // pred_fallthru
      _
    // Predicated region
    $region10: #{tpu_custom_call.1} parent=1 // pred_check
      _
    $region11: #{tpu_custom_call.1} parent=1 // pred_check_branch
      %16 = sbr.rel (0) target = $region13
    $region12: #{tpu_custom_call.1} parent=1 // pred_region
      _
    $region13: #{tpu_custom_call.1} parent=1 // pred_fallthru
      _
    // Predicated region
    $region14: #{tpu_custom_call.1} parent=1 // pred_check
      _
    $region15: #{tpu_custom_call.1} parent=1 // pred_check_branch
      %18 = sbr.rel (0) target = $region17
    $region16: #{tpu_custom_call.1} parent=1 // pred_region
      %s20 = ssub.s32 512, 512
      %21 = vsyncadd [#allocation4], %s20
      %s22 = sshll.u32 [#allocation3], 4
      %s23 = int_to_ptr.vmem [resolvable:$true] %s22
      %28 = dma.hbm_to_vmem [thread:$0]  %s3, 512, %s23, [#allocation4], 128, 128, 8
    $region17: #{tpu_custom_call.1} parent=1 // pred_fallthru
      _
    // Predicated region
    $region18: #{tpu_custom_call.1} parent=1 // pred_check
      _
    $region19: #{tpu_custom_call.1} parent=1 // pred_check_branch
      %30 = sbr.rel (0) target = $region21
    $region20: #{tpu_custom_call.1} parent=1 // pred_region
      %31 = dma.done [#allocation4], 512
    $region21: #{tpu_custom_call.1} parent=1 // pred_fallthru
      _
    %v32 = vld [vmem:[%s0] sm:$0xff]
    %v33 = vld [vmem:[%s0 + $0x8] sm:$0xff]
    %v34 = vld [vmem:[%s1] sm:$0xf]
    %v35 = vld [vmem:[%s2] sm:$0x1]
    %v37 = vlaneseq
    %v38 = vshrl.u32 %v37, 7
    %v39 = vsub.s32 0, %v38
    %v40 = vrot.slane %v35, %v39
    %vm42 = vcmask 31744
    %v44 = vsel %vm42, %v32, 0
    %v47 = vsel %vm42, %v33, 0
    %vm49 = vcmask 1043456
    %v51 = vsel %vm49, %v34, 0
    %53 = vmatprep.subr.mxu0 0.0
    %54 = vmatpush1.msra.mxu0 %v51
    %55 = vmatprep.subr.mxu0 0.0
    %56 = vmatpush1.msra.mxu0 0.0
    %57 = vmatprep.subr.mxu0 0.0
    %58 = vmatpush1.msra.mxu0 0.0
    %59 = vmatprep.subr.mxu0 0.0
    %60 = vmatpush1.msra.mxu0 0.0
    %61 = vmatprep.subr.mxu0 0.0
    %62 = vmatpush1.msra.mxu0 0.0
    %63 = vmatprep.subr.mxu0 0.0
    %64 = vmatpush1.msra.mxu0 0.0
    %65 = vmatprep.subr.mxu0 0.0
    %66 = vmatpush1.msra.mxu0 0.0
    %67 = vmatprep.subr.mxu0 0.0
    %68 = vmatpush1.msra.mxu0 0.0
    %69 = vmatprep.subr.mxu0 0.0
    %70 = vmatpush1.msra.mxu0 0.0
    %71 = vmatprep.subr.mxu0 0.0
    %72 = vmatpush1.msra.mxu0 0.0
    %73 = vmatprep.subr.mxu0 0.0
    %74 = vmatpush1.msra.mxu0 0.0
    %75 = vmatprep.subr.mxu0 0.0
    %76 = vmatpush1.msra.mxu0 0.0
    %77 = vmatprep.subr.mxu0 0.0
    %78 = vmatpush1.msra.mxu0 0.0
    %79 = vmatprep.subr.mxu0 0.0
    %80 = vmatpush1.msra.mxu0 0.0
    %81 = vmatprep.subr.mxu0 0.0
    %82 = vmatpush1.msra.mxu0 0.0
    %83 = vmatprep.subr.mxu0 0.0
    %84 = vmatpush1.msra.mxu0 0.0
    %85 = vmatprep.subr.mxu0 0.0
    %86 = vmatpush1.msra.mxu0 0.0
    %87 = vmatprep.subr.mxu0 0.0
    %88 = vmatpush1.msra.mxu0 0.0
    %89 = vmatprep.subr.mxu0 0.0
    %90 = vmatpush1.msra.mxu0 0.0
    %91 = vmatprep.subr.mxu0 0.0
    %92 = vmatpush1.msra.mxu0 0.0
    %93 = vmatprep.subr.mxu0 0.0
    %94 = vmatpush1.msra.mxu0 0.0
    %95 = vmatprep.subr.mxu0 0.0
    %96 = vmatpush1.msra.mxu0 0.0
    %97 = vmatprep.subr.mxu0 0.0
    %98 = vmatpush1.msra.mxu0 0.0
    %99 = vmatprep.subr.mxu0 0.0
    %100 = vmatpush1.msra.mxu0 0.0
    %101 = vmatprep.subr.mxu0 0.0
    %102 = vmatpush1.msra.mxu0 0.0
    %103 = vmatprep.subr.mxu0 0.0
    %104 = vmatpush1.msra.mxu0 0.0
    %105 = vmatprep.subr.mxu0 0.0
    %106 = vmatpush1.msra.mxu0 0.0
    %107 = vmatprep.subr.mxu0 0.0
    %108 = vmatpush1.msra.mxu0 0.0
    %109 = vmatprep.subr.mxu0 0.0
    %110 = vmatpush1.msra.mxu0 0.0
    %111 = vmatprep.subr.mxu0 0.0
    %112 = vmatpush1.msra.mxu0 0.0
    %113 = vmatprep.subr.mxu0 0.0
    %114 = vmatpush1.msra.mxu0 0.0
    %115 = vmatprep.subr.mxu0 0.0
    %116 = vmatpush1.msra.mxu0 0.0
    %117 = vmatprep.mubr.f32.mxu0 0.0
    %118 = vmatmul.mubr.f32.gmra.mrb[0].mxu0 %v44
    %v119 = vpop.f32.mrb[0].mxu0
    %v120 = vadd.f32 %v40, %v119
    %v121 = vpop.f32.mrb[0].mxu0
    %122 = vmatprep.mubr.f32.mxu0 0.0
    %123 = vmatmul.mubr.f32.gmra.mrb[0].mxu0 %v47
    %v124 = vpop.f32.mrb[0].mxu0
    %v125 = vadd.f32 %v40, %v124
    %v126 = vpop.f32.mrb[0].mxu0
    %127 = vdwg.mxu0
    %vm128 = vcmask 261120
    %129 = vst.msk [vmem:[#allocation2] sm:$0xff] %vm128, %v120
    %130 = vst.msk [vmem:[#allocation2 + $0x8] sm:$0xff] %vm128, %v125
    %v131 = vld [vmem:[#allocation3] sm:$0xff]
    %v132 = vld [vmem:[#allocation3 + $0x8] sm:$0xff]
    %v133 = vld [vmem:[#allocation3 + $0x10] sm:$0xff]
    %v134 = vld [vmem:[#allocation3 + $0x18] sm:$0xff]
    %v135 = vld [vmem:[#allocation2] sm:$0x3]
    %v137 = vsel %vm128, 0.0, 0
    %139 = vmatprep.subr.mxu0 0.0
    %140 = vmatpush1.msra.mxu0 %v131
    %141 = vmatprep.subr.mxu0 0.0
    %142 = vmatpush1.msra.mxu0 %v132
    %143 = vmatprep.subr.mxu0 0.0
    %144 = vmatpush1.msra.mxu0 %v133
    %145 = vmatprep.subr.mxu0 0.0
    %146 = vmatpush1.msra.mxu0 %v134
    %147 = vmatprep.subr.mxu0 0.0
    %148 = vmatpush1.msra.mxu0 0.0
    %149 = vmatprep.subr.mxu0 0.0
    %150 = vmatpush1.msra.mxu0 0.0
    %151 = vmatprep.subr.mxu0 0.0
    %152 = vmatpush1.msra.mxu0 0.0
    %153 = vmatprep.subr.mxu0 0.0
    %154 = vmatpush1.msra.mxu0 0.0
    %155 = vmatprep.subr.mxu0 0.0
    %156 = vmatpush1.msra.mxu0 0.0
    %157 = vmatprep.subr.mxu0 0.0
    %158 = vmatpush1.msra.mxu0 0.0
    %159 = vmatprep.subr.mxu0 0.0
    %160 = vmatpush1.msra.mxu0 0.0
    %161 = vmatprep.subr.mxu0 0.0
    %162 = vmatpush1.msra.mxu0 0.0
    %163 = vmatprep.subr.mxu0 0.0
    %164 = vmatpush1.msra.mxu0 0.0
    %165 = vmatprep.subr.mxu0 0.0
    %166 = vmatpush1.msra.mxu0 0.0
    %167 = vmatprep.subr.mxu0 0.0
    %168 = vmatpush1.msra.mxu0 0.0
    %169 = vmatprep.subr.mxu0 0.0
    %170 = vmatpush1.msra.mxu0 0.0
    %171 = vmatprep.subr.mxu0 0.0
    %172 = vmatpush1.msra.mxu0 0.0
    %173 = vmatprep.subr.mxu0 0.0
    %174 = vmatpush1.msra.mxu0 0.0
    %175 = vmatprep.subr.mxu0 0.0
    %176 = vmatpush1.msra.mxu0 0.0
    %177 = vmatprep.subr.mxu0 0.0
    %178 = vmatpush1.msra.mxu0 0.0
    %179 = vmatprep.subr.mxu0 0.0
    %180 = vmatpush1.msra.mxu0 0.0
    %181 = vmatprep.subr.mxu0 0.0
    %182 = vmatpush1.msra.mxu0 0.0
    %183 = vmatprep.subr.mxu0 0.0
    %184 = vmatpush1.msra.mxu0 0.0
    %185 = vmatprep.subr.mxu0 0.0
    %186 = vmatpush1.msra.mxu0 0.0
    %187 = vmatprep.subr.mxu0 0.0
    %188 = vmatpush1.msra.mxu0 0.0
    %189 = vmatprep.subr.mxu0 0.0
    %190 = vmatpush1.msra.mxu0 0.0
    %191 = vmatprep.subr.mxu0 0.0
    %192 = vmatpush1.msra.mxu0 0.0
    %193 = vmatprep.subr.mxu0 0.0
    %194 = vmatpush1.msra.mxu0 0.0
    %195 = vmatprep.subr.mxu0 0.0
    %196 = vmatpush1.msra.mxu0 0.0
    %197 = vmatprep.subr.mxu0 0.0
    %198 = vmatpush1.msra.mxu0 0.0
    %199 = vmatprep.subr.mxu0 0.0
    %200 = vmatpush1.msra.mxu0 0.0
    %201 = vmatprep.subr.mxu0 0.0
    %202 = vmatpush1.msra.mxu0 0.0
    %203 = vmatprep.mubr.f32.mxu0 0.0
    %204 = vmatmul.mubr.f32.gmra.mrb[0].mxu0 %v137
    %v205 = vpop.f32.mrb[0].mxu0
    %v206 = vadd.f32 0.0, %v205
    %v207 = vpop.f32.mrb[0].mxu0
    %208 = vdwg.mxu0
    %v209 = vadd.f32 %v135, %v206
    %vm210 = vcmask 254976
    %211 = vst.msk [vmem:[#allocation6] sm:$0x3] %vm210, %v209
    %v212 = vld [vmem:[#allocation2 + $0x2] sm:$0x3]
    %v213 = vadd.f32 %v212, %v206
    %v214 = vtanh.pop %v213
    %s215 = scalar_lea.vmem [#allocation6], 2
    %216 = vst.msk [vmem:[%s215] sm:$0x3] %vm210, %v213
    %v217 = vld [vmem:[#allocation2 + $0x4] sm:$0x3]
    %v219 = vsel %vm128, %v214, 0
    %221 = vmatprep.subr.mxu0 0.0
    %222 = vmatpush1.msra.mxu0 %v131
    %223 = vmatprep.subr.mxu0 0.0
    %224 = vmatpush1.msra.mxu0 %v132
    %225 = vmatprep.subr.mxu0 0.0
    %226 = vmatpush1.msra.mxu0 %v133
    %227 = vmatprep.subr.mxu0 0.0
    %228 = vmatpush1.msra.mxu0 %v134
    %229 = vmatprep.subr.mxu0 0.0
    %230 = vmatpush1.msra.mxu0 0.0
    %231 = vmatprep.subr.mxu0 0.0
    %232 = vmatpush1.msra.mxu0 0.0
    %233 = vmatprep.subr.mxu0 0.0
    %234 = vmatpush1.msra.mxu0 0.0
    %235 = vmatprep.subr.mxu0 0.0
    %236 = vmatpush1.msra.mxu0 0.0
    %237 = vmatprep.subr.mxu0 0.0
    %238 = vmatpush1.msra.mxu0 0.0
    %239 = vmatprep.subr.mxu0 0.0
    %240 = vmatpush1.msra.mxu0 0.0
    %241 = vmatprep.subr.mxu0 0.0
    %242 = vmatpush1.msra.mxu0 0.0
    %243 = vmatprep.subr.mxu0 0.0
    %244 = vmatpush1.msra.mxu0 0.0
    %245 = vmatprep.subr.mxu0 0.0
    %246 = vmatpush1.msra.mxu0 0.0
    %247 = vmatprep.subr.mxu0 0.0
    %248 = vmatpush1.msra.mxu0 0.0
    %249 = vmatprep.subr.mxu0 0.0
    %250 = vmatpush1.msra.mxu0 0.0
    %251 = vmatprep.subr.mxu0 0.0
    %252 = vmatpush1.msra.mxu0 0.0
    %253 = vmatprep.subr.mxu0 0.0
    %254 = vmatpush1.msra.mxu0 0.0
    %255 = vmatprep.subr.mxu0 0.0
    %256 = vmatpush1.msra.mxu0 0.0
    %257 = vmatprep.subr.mxu0 0.0
    %258 = vmatpush1.msra.mxu0 0.0
    %259 = vmatprep.subr.mxu0 0.0
    %260 = vmatpush1.msra.mxu0 0.0
    %261 = vmatprep.subr.mxu0 0.0
    %262 = vmatpush1.msra.mxu0 0.0
    %263 = vmatprep.subr.mxu0 0.0
    %264 = vmatpush1.msra.mxu0 0.0
    %265 = vmatprep.subr.mxu0 0.0
    %266 = vmatpush1.msra.mxu0 0.0
    %267 = vmatprep.subr.mxu0 0.0
    %268 = vmatpush1.msra.mxu0 0.0
    %269 = vmatprep.subr.mxu0 0.0
    %270 = vmatpush1.msra.mxu0 0.0
    %271 = vmatprep.subr.mxu0 0.0
    %272 = vmatpush1.msra.mxu0 0.0
    %273 = vmatprep.subr.mxu0 0.0
    %274 = vmatpush1.msra.mxu0 0.0
    %275 = vmatprep.subr.mxu0 0.0
    %276 = vmatpush1.msra.mxu0 0.0
    %277 = vmatprep.subr.mxu0 0.0
    %278 = vmatpush1.msra.mxu0 0.0
    %279 = vmatprep.subr.mxu0 0.0
    %280 = vmatpush1.msra.mxu0 0.0
    %281 = vmatprep.subr.mxu0 0.0
    %282 = vmatpush1.msra.mxu0 0.0
    %283 = vmatprep.subr.mxu0 0.0
    %284 = vmatpush1.msra.mxu0 0.0
    %285 = vmatprep.mubr.f32.mxu0 0.0
    %286 = vmatmul.mubr.f32.gmra.mrb[0].mxu0 %v219
    %v287 = vpop.f32.mrb[0].mxu0
    %v288 = vadd.f32 0.0, %v287
    %v289 = vpop.f32.mrb[0].mxu0
    %290 = vdwg.mxu0
    %v291 = vadd.f32 %v217, %v288
    %v292 = vtanh.pop %v291
    %s293 = scalar_lea.vmem [#allocation6], 4
    %294 = vst.msk [vmem:[%s293] sm:$0x3] %vm210, %v291
    %v295 = vld [vmem:[#allocation2 + $0x6] sm:$0x3]
    %v297 = vsel %vm128, %v292, 0
    %299 = vmatprep.subr.mxu0 0.0
    %300 = vmatpush1.msra.mxu0 %v131
    %301 = vmatprep.subr.mxu0 0.0
    %302 = vmatpush1.msra.mxu0 %v132
    %303 = vmatprep.subr.mxu0 0.0
    %304 = vmatpush1.msra.mxu0 %v133
    %305 = vmatprep.subr.mxu0 0.0
    %306 = vmatpush1.msra.mxu0 %v134
    %307 = vmatprep.subr.mxu0 0.0
    %308 = vmatpush1.msra.mxu0 0.0
    %309 = vmatprep.subr.mxu0 0.0
    %310 = vmatpush1.msra.mxu0 0.0
    %311 = vmatprep.subr.mxu0 0.0
    %312 = vmatpush1.msra.mxu0 0.0
    %313 = vmatprep.subr.mxu0 0.0
    %314 = vmatpush1.msra.mxu0 0.0
    %315 = vmatprep.subr.mxu0 0.0
    %316 = vmatpush1.msra.mxu0 0.0
    %317 = vmatprep.subr.mxu0 0.0
    %318 = vmatpush1.msra.mxu0 0.0
    %319 = vmatprep.subr.mxu0 0.0
    %320 = vmatpush1.msra.mxu0 0.0
    %321 = vmatprep.subr.mxu0 0.0
    %322 = vmatpush1.msra.mxu0 0.0
    %323 = vmatprep.subr.mxu0 0.0
    %324 = vmatpush1.msra.mxu0 0.0
    %325 = vmatprep.subr.mxu0 0.0
    %326 = vmatpush1.msra.mxu0 0.0
    %327 = vmatprep.subr.mxu0 0.0
    %328 = vmatpush1.msra.mxu0 0.0
    %329 = vmatprep.subr.mxu0 0.0
    %330 = vmatpush1.msra.mxu0 0.0
    %331 = vmatprep.subr.mxu0 0.0
    %332 = vmatpush1.msra.mxu0 0.0
    %333 = vmatprep.subr.mxu0 0.0
    %334 = vmatpush1.msra.mxu0 0.0
    %335 = vmatprep.subr.mxu0 0.0
    %336 = vmatpush1.msra.mxu0 0.0
    %337 = vmatprep.subr.mxu0 0.0
    %338 = vmatpush1.msra.mxu0 0.0
    %339 = vmatprep.subr.mxu0 0.0
    %340 = vmatpush1.msra.mxu0 0.0
    %341 = vmatprep.subr.mxu0 0.0
    %342 = vmatpush1.msra.mxu0 0.0
    %343 = vmatprep.subr.mxu0 0.0
    %344 = vmatpush1.msra.mxu0 0.0
    %345 = vmatprep.subr.mxu0 0.0
    %346 = vmatpush1.msra.mxu0 0.0
    %347 = vmatprep.subr.mxu0 0.0
    %348 = vmatpush1.msra.mxu0 0.0
    %349 = vmatprep.subr.mxu0 0.0
    %350 = vmatpush1.msra.mxu0 0.0
    %351 = vmatprep.subr.mxu0 0.0
    %352 = vmatpush1.msra.mxu0 0.0
    %353 = vmatprep.subr.mxu0 0.0
    %354 = vmatpush1.msra.mxu0 0.0
    %355 = vmatprep.subr.mxu0 0.0
    %356 = vmatpush1.msra.mxu0 0.0
    %357 = vmatprep.subr.mxu0 0.0
    %358 = vmatpush1.msra.mxu0 0.0
    %359 = vmatprep.subr.mxu0 0.0
    %360 = vmatpush1.msra.mxu0 0.0
    %361 = vmatprep.subr.mxu0 0.0
    %362 = vmatpush1.msra.mxu0 0.0
    %363 = vmatprep.mubr.f32.mxu0 0.0
    %364 = vmatmul.mubr.f32.gmra.mrb[0].mxu0 %v297
    %v365 = vpop.f32.mrb[0].mxu0
    %v366 = vadd.f32 0.0, %v365
    %v367 = vpop.f32.mrb[0].mxu0
    %368 = vdwg.mxu0
    %v369 = vadd.f32 %v295, %v366
    %v370 = vadd.f32 %v369, 0.0
    %v371 = vtanh.pop %v370
    %s372 = scalar_lea.vmem [#allocation6], 6
    %373 = vst.msk [vmem:[%s372] sm:$0x3] %vm210, %v369
    %v374 = vld [vmem:[#allocation2 + $0x8] sm:$0x3]
    %v376 = vsel %vm128, %v371, 0
    %378 = vmatprep.subr.mxu0 0.0
    %379 = vmatpush1.msra.mxu0 %v131
    %380 = vmatprep.subr.mxu0 0.0
    %381 = vmatpush1.msra.mxu0 %v132
    %382 = vmatprep.subr.mxu0 0.0
    %383 = vmatpush1.msra.mxu0 %v133
    %384 = vmatprep.subr.mxu0 0.0
    %385 = vmatpush1.msra.mxu0 %v134
    %386 = vmatprep.subr.mxu0 0.0
    %387 = vmatpush1.msra.mxu0 0.0
    %388 = vmatprep.subr.mxu0 0.0
    %389 = vmatpush1.msra.mxu0 0.0
    %390 = vmatprep.subr.mxu0 0.0
    %391 = vmatpush1.msra.mxu0 0.0
    %392 = vmatprep.subr.mxu0 0.0
    %393 = vmatpush1.msra.mxu0 0.0
    %394 = vmatprep.subr.mxu0 0.0
    %395 = vmatpush1.msra.mxu0 0.0
    %396 = vmatprep.subr.mxu0 0.0
    %397 = vmatpush1.msra.mxu0 0.0
    %398 = vmatprep.subr.mxu0 0.0
    %399 = vmatpush1.msra.mxu0 0.0
    %400 = vmatprep.subr.mxu0 0.0
    %401 = vmatpush1.msra.mxu0 0.0
    %402 = vmatprep.subr.mxu0 0.0
    %403 = vmatpush1.msra.mxu0 0.0
    %404 = vmatprep.subr.mxu0 0.0
    %405 = vmatpush1.msra.mxu0 0.0
    %406 = vmatprep.subr.mxu0 0.0
    %407 = vmatpush1.msra.mxu0 0.0
    %408 = vmatprep.subr.mxu0 0.0
    %409 = vmatpush1.msra.mxu0 0.0
    %410 = vmatprep.subr.mxu0 0.0
    %411 = vmatpush1.msra.mxu0 0.0
    %412 = vmatprep.subr.mxu0 0.0
    %413 = vmatpush1.msra.mxu0 0.0
    %414 = vmatprep.subr.mxu0 0.0
    %415 = vmatpush1.msra.mxu0 0.0
    %416 = vmatprep.subr.mxu0 0.0
    %417 = vmatpush1.msra.mxu0 0.0
    %418 = vmatprep.subr.mxu0 0.0
    %419 = vmatpush1.msra.mxu0 0.0
    %420 = vmatprep.subr.mxu0 0.0
    %421 = vmatpush1.msra.mxu0 0.0
    %422 = vmatprep.subr.mxu0 0.0
    %423 = vmatpush1.msra.mxu0 0.0
    %424 = vmatprep.subr.mxu0 0.0
    %425 = vmatpush1.msra.mxu0 0.0
    %426 = vmatprep.subr.mxu0 0.0
    %427 = vmatpush1.msra.mxu0 0.0
    %428 = vmatprep.subr.mxu0 0.0
    %429 = vmatpush1.msra.mxu0 0.0
    %430 = vmatprep.subr.mxu0 0.0
    %431 = vmatpush1.msra.mxu0 0.0
    %432 = vmatprep.subr.mxu0 0.0
    %433 = vmatpush1.msra.mxu0 0.0
    %434 = vmatprep.subr.mxu0 0.0
    %435 = vmatpush1.msra.mxu0 0.0
    %436 = vmatprep.subr.mxu0 0.0
    %437 = vmatpush1.msra.mxu0 0.0
    %438 = vmatprep.subr.mxu0 0.0
    %439 = vmatpush1.msra.mxu0 0.0
    %440 = vmatprep.subr.mxu0 0.0
    %441 = vmatpush1.msra.mxu0 0.0
    %442 = vmatprep.mubr.f32.mxu0 0.0
    %443 = vmatmul.mubr.f32.gmra.mrb[0].mxu0 %v376
    %v444 = vpop.f32.mrb[0].mxu0
    %v445 = vadd.f32 0.0, %v444
    %v446 = vpop.f32.mrb[0].mxu0
    %447 = vdwg.mxu0
    %v448 = vadd.f32 %v374, %v445
    %v449 = vtanh.pop %v448
    %s450 = scalar_lea.vmem [#allocation6], 8
    %451 = vst.msk [vmem:[%s450] sm:$0x3] %vm210, %v448
    %v452 = vld [vmem:[#allocation2 + $0xa] sm:$0x3]
    %v454 = vsel %vm128, %v449, 0
    %456 = vmatprep.subr.mxu0 0.0
    %457 = vmatpush1.msra.mxu0 %v131
    %458 = vmatprep.subr.mxu0 0.0
    %459 = vmatpush1.msra.mxu0 %v132
    %460 = vmatprep.subr.mxu0 0.0
    %461 = vmatpush1.msra.mxu0 %v133
    %462 = vmatprep.subr.mxu0 0.0
    %463 = vmatpush1.msra.mxu0 %v134
    %464 = vmatprep.subr.mxu0 0.0
    %465 = vmatpush1.msra.mxu0 0.0
    %466 = vmatprep.subr.mxu0 0.0
    %467 = vmatpush1.msra.mxu0 0.0
    %468 = vmatprep.subr.mxu0 0.0
    %469 = vmatpush1.msra.mxu0 0.0
    %470 = vmatprep.subr.mxu0 0.0
    %471 = vmatpush1.msra.mxu0 0.0
    %472 = vmatprep.subr.mxu0 0.0
    %473 = vmatpush1.msra.mxu0 0.0
    %474 = vmatprep.subr.mxu0 0.0
    %475 = vmatpush1.msra.mxu0 0.0
    %476 = vmatprep.subr.mxu0 0.0
    %477 = vmatpush1.msra.mxu0 0.0
    %478 = vmatprep.subr.mxu0 0.0
    %479 = vmatpush1.msra.mxu0 0.0
    %480 = vmatprep.subr.mxu0 0.0
    %481 = vmatpush1.msra.mxu0 0.0
    %482 = vmatprep.subr.mxu0 0.0
    %483 = vmatpush1.msra.mxu0 0.0
    %484 = vmatprep.subr.mxu0 0.0
    %485 = vmatpush1.msra.mxu0 0.0
    %486 = vmatprep.subr.mxu0 0.0
    %487 = vmatpush1.msra.mxu0 0.0
    %488 = vmatprep.subr.mxu0 0.0
    %489 = vmatpush1.msra.mxu0 0.0
    %490 = vmatprep.subr.mxu0 0.0
    %491 = vmatpush1.msra.mxu0 0.0
    %492 = vmatprep.subr.mxu0 0.0
    %493 = vmatpush1.msra.mxu0 0.0
    %494 = vmatprep.subr.mxu0 0.0
    %495 = vmatpush1.msra.mxu0 0.0
    %496 = vmatprep.subr.mxu0 0.0
    %497 = vmatpush1.msra.mxu0 0.0
    %498 = vmatprep.subr.mxu0 0.0
    %499 = vmatpush1.msra.mxu0 0.0
    %500 = vmatprep.subr.mxu0 0.0
    %501 = vmatpush1.msra.mxu0 0.0
    %502 = vmatprep.subr.mxu0 0.0
    %503 = vmatpush1.msra.mxu0 0.0
    %504 = vmatprep.subr.mxu0 0.0
    %505 = vmatpush1.msra.mxu0 0.0
    %506 = vmatprep.subr.mxu0 0.0
    %507 = vmatpush1.msra.mxu0 0.0
    %508 = vmatprep.subr.mxu0 0.0
    %509 = vmatpush1.msra.mxu0 0.0
    %510 = vmatprep.subr.mxu0 0.0
    %511 = vmatpush1.msra.mxu0 0.0
    %512 = vmatprep.subr.mxu0 0.0
    %513 = vmatpush1.msra.mxu0 0.0
    %514 = vmatprep.subr.mxu0 0.0
    %515 = vmatpush1.msra.mxu0 0.0
    %516 = vmatprep.subr.mxu0 0.0
    %517 = vmatpush1.msra.mxu0 0.0
    %518 = vmatprep.subr.mxu0 0.0
    %519 = vmatpush1.msra.mxu0 0.0
    %520 = vmatprep.mubr.f32.mxu0 0.0
    %521 = vmatmul.mubr.f32.gmra.mrb[0].mxu0 %v454
    %v522 = vpop.f32.mrb[0].mxu0
    %v523 = vadd.f32 0.0, %v522
    %v524 = vpop.f32.mrb[0].mxu0
    %525 = vdwg.mxu0
    %v526 = vadd.f32 %v452, %v523
    %v527 = vtanh.pop %v526
    %s528 = scalar_lea.vmem [#allocation6], 10
    %529 = vst.msk [vmem:[%s528] sm:$0x3] %vm210, %v526
    %v530 = vld [vmem:[#allocation2 + $0xc] sm:$0x3]
    %v532 = vsel %vm128, %v527, 0
    %534 = vmatprep.subr.mxu0 0.0
    %535 = vmatpush1.msra.mxu0 %v131
    %536 = vmatprep.subr.mxu0 0.0
    %537 = vmatpush1.msra.mxu0 %v132
    %538 = vmatprep.subr.mxu0 0.0
    %539 = vmatpush1.msra.mxu0 %v133
    %540 = vmatprep.subr.mxu0 0.0
    %541 = vmatpush1.msra.mxu0 %v134
    %542 = vmatprep.subr.mxu0 0.0
    %543 = vmatpush1.msra.mxu0 0.0
    %544 = vmatprep.subr.mxu0 0.0
    %545 = vmatpush1.msra.mxu0 0.0
    %546 = vmatprep.subr.mxu0 0.0
    %547 = vmatpush1.msra.mxu0 0.0
    %548 = vmatprep.subr.mxu0 0.0
    %549 = vmatpush1.msra.mxu0 0.0
    %550 = vmatprep.subr.mxu0 0.0
    %551 = vmatpush1.msra.mxu0 0.0
    %552 = vmatprep.subr.mxu0 0.0
    %553 = vmatpush1.msra.mxu0 0.0
    %554 = vmatprep.subr.mxu0 0.0
    %555 = vmatpush1.msra.mxu0 0.0
    %556 = vmatprep.subr.mxu0 0.0
    %557 = vmatpush1.msra.mxu0 0.0
    %558 = vmatprep.subr.mxu0 0.0
    %559 = vmatpush1.msra.mxu0 0.0
    %560 = vmatprep.subr.mxu0 0.0
    %561 = vmatpush1.msra.mxu0 0.0
    %562 = vmatprep.subr.mxu0 0.0
    %563 = vmatpush1.msra.mxu0 0.0
    %564 = vmatprep.subr.mxu0 0.0
    %565 = vmatpush1.msra.mxu0 0.0
    %566 = vmatprep.subr.mxu0 0.0
    %567 = vmatpush1.msra.mxu0 0.0
    %568 = vmatprep.subr.mxu0 0.0
    %569 = vmatpush1.msra.mxu0 0.0
    %570 = vmatprep.subr.mxu0 0.0
    %571 = vmatpush1.msra.mxu0 0.0
    %572 = vmatprep.subr.mxu0 0.0
    %573 = vmatpush1.msra.mxu0 0.0
    %574 = vmatprep.subr.mxu0 0.0
    %575 = vmatpush1.msra.mxu0 0.0
    %576 = vmatprep.subr.mxu0 0.0
    %577 = vmatpush1.msra.mxu0 0.0
    %578 = vmatprep.subr.mxu0 0.0
    %579 = vmatpush1.msra.mxu0 0.0
    %580 = vmatprep.subr.mxu0 0.0
    %581 = vmatpush1.msra.mxu0 0.0
    %582 = vmatprep.subr.mxu0 0.0
    %583 = vmatpush1.msra.mxu0 0.0
    %584 = vmatprep.subr.mxu0 0.0
    %585 = vmatpush1.msra.mxu0 0.0
    %586 = vmatprep.subr.mxu0 0.0
    %587 = vmatpush1.msra.mxu0 0.0
    %588 = vmatprep.subr.mxu0 0.0
    %589 = vmatpush1.msra.mxu0 0.0
    %590 = vmatprep.subr.mxu0 0.0
    %591 = vmatpush1.msra.mxu0 0.0
    %592 = vmatprep.subr.mxu0 0.0
    %593 = vmatpush1.msra.mxu0 0.0
    %594 = vmatprep.subr.mxu0 0.0
    %595 = vmatpush1.msra.mxu0 0.0
    %596 = vmatprep.subr.mxu0 0.0
    %597 = vmatpush1.msra.mxu0 0.0
    %598 = vmatprep.mubr.f32.mxu0 0.0
    %599 = vmatmul.mubr.f32.gmra.mrb[0].mxu0 %v532
    %v600 = vpop.f32.mrb[0].mxu0
    %v601 = vadd.f32 0.0, %v600
    %v602 = vpop.f32.mrb[0].mxu0
    %603 = vdwg.mxu0
    %v604 = vadd.f32 %v530, %v601
    %v605 = vadd.f32 %v604, %v209
    %v606 = vtanh.pop %v605
    %s607 = scalar_lea.vmem [#allocation6], 12
    %608 = vst.msk [vmem:[%s607] sm:$0x3] %vm210, %v604
    %v609 = vld [vmem:[#allocation2 + $0xe] sm:$0x3]
    %v611 = vsel %vm128, %v606, 0
    %613 = vmatprep.subr.mxu0 0.0
    %614 = vmatpush1.msra.mxu0 %v131
    %615 = vmatprep.subr.mxu0 0.0
    %616 = vmatpush1.msra.mxu0 %v132
    %617 = vmatprep.subr.mxu0 0.0
    %618 = vmatpush1.msra.mxu0 %v133
    %619 = vmatprep.subr.mxu0 0.0
    %620 = vmatpush1.msra.mxu0 %v134
    %621 = vmatprep.subr.mxu0 0.0
    %622 = vmatpush1.msra.mxu0 0.0
    %623 = vmatprep.subr.mxu0 0.0
    %624 = vmatpush1.msra.mxu0 0.0
    %625 = vmatprep.subr.mxu0 0.0
    %626 = vmatpush1.msra.mxu0 0.0
    %627 = vmatprep.subr.mxu0 0.0
    %628 = vmatpush1.msra.mxu0 0.0
    %629 = vmatprep.subr.mxu0 0.0
    %630 = vmatpush1.msra.mxu0 0.0
    %631 = vmatprep.subr.mxu0 0.0
    %632 = vmatpush1.msra.mxu0 0.0
    %633 = vmatprep.subr.mxu0 0.0
    %634 = vmatpush1.msra.mxu0 0.0
    %635 = vmatprep.subr.mxu0 0.0
    %636 = vmatpush1.msra.mxu0 0.0
    %637 = vmatprep.subr.mxu0 0.0
    %638 = vmatpush1.msra.mxu0 0.0
    %639 = vmatprep.subr.mxu0 0.0
    %640 = vmatpush1.msra.mxu0 0.0
    %641 = vmatprep.subr.mxu0 0.0
    %642 = vmatpush1.msra.mxu0 0.0
    %643 = vmatprep.subr.mxu0 0.0
    %644 = vmatpush1.msra.mxu0 0.0
    %645 = vmatprep.subr.mxu0 0.0
    %646 = vmatpush1.msra.mxu0 0.0
    %647 = vmatprep.subr.mxu0 0.0
    %648 = vmatpush1.msra.mxu0 0.0
    %649 = vmatprep.subr.mxu0 0.0
    %650 = vmatpush1.msra.mxu0 0.0
    %651 = vmatprep.subr.mxu0 0.0
    %652 = vmatpush1.msra.mxu0 0.0
    %653 = vmatprep.subr.mxu0 0.0
    %654 = vmatpush1.msra.mxu0 0.0
    %655 = vmatprep.subr.mxu0 0.0
    %656 = vmatpush1.msra.mxu0 0.0
    %657 = vmatprep.subr.mxu0 0.0
    %658 = vmatpush1.msra.mxu0 0.0
    %659 = vmatprep.subr.mxu0 0.0
    %660 = vmatpush1.msra.mxu0 0.0
    %661 = vmatprep.subr.mxu0 0.0
    %662 = vmatpush1.msra.mxu0 0.0
    %663 = vmatprep.subr.mxu0 0.0
    %664 = vmatpush1.msra.mxu0 0.0
    %665 = vmatprep.subr.mxu0 0.0
    %666 = vmatpush1.msra.mxu0 0.0
    %667 = vmatprep.subr.mxu0 0.0
    %668 = vmatpush1.msra.mxu0 0.0
    %669 = vmatprep.subr.mxu0 0.0
    %670 = vmatpush1.msra.mxu0 0.0
    %671 = vmatprep.subr.mxu0 0.0
    %672 = vmatpush1.msra.mxu0 0.0
    %673 = vmatprep.subr.mxu0 0.0
    %674 = vmatpush1.msra.mxu0 0.0
    %675 = vmatprep.subr.mxu0 0.0
    %676 = vmatpush1.msra.mxu0 0.0
    %677 = vmatprep.mubr.f32.mxu0 0.0
    %678 = vmatmul.mubr.f32.gmra.mrb[0].mxu0 %v611
    %v679 = vpop.f32.mrb[0].mxu0
    %v680 = vadd.f32 0.0, %v679
    %v681 = vpop.f32.mrb[0].mxu0
    %682 = vdwg.mxu0
    %v683 = vadd.f32 %v609, %v680
    %s684 = scalar_lea.vmem [#allocation6], 14
    %685 = vst.msk [vmem:[%s684] sm:$0x3] %vm210, %v683
    // Predicated region
    $region22: #{tpu_custom_call.1} parent=1 // pred_check
      _
    $region23: #{tpu_custom_call.1} parent=1 // pred_check_branch
      %687 = sbr.rel (0) target = $region25
    $region24: #{tpu_custom_call.1} parent=1 // pred_region
      %s689 = ssub.s32 256, 256
      %690 = vsyncadd [#allocation5], %s689
      %s691 = sshll.u32 [#allocation6], 4
      %s692 = int_to_ptr.vmem [resolvable:$true] %s691
      %697 = dma.vmem_to_hbm [thread:$0]  %s692, 256, %s4, [#allocation5], 32, 32, 2
    $region25: #{tpu_custom_call.1} parent=1 // pred_fallthru
      _
    // Predicated region
    $region26: #{tpu_custom_call.1} parent=1 // pred_check
      _
    $region27: #{tpu_custom_call.1} parent=1 // pred_check_branch
      %699 = sbr.rel (0) target = $region29
    $region28: #{tpu_custom_call.1} parent=1 // pred_region
      %700 = dma.done [#allocation5], 256
    $region29: #{tpu_custom_call.1} parent=1 // pred_fallthru
      _
    %701 = vsyncpa [#allocation4], 1
    %702 = vsyncpa [#allocation5], 1

</llo_original>
